<compile_context>
chip_gen: v7x
topology: tpu7x:2x2x1
jax: 0.10.0
libtpu: 0.0.40
codegen_flags: <defaults>
</compile_context>

<pallas_src>
import functools

import jax
import jax.numpy as jnp
from jax.experimental import pallas as pl
from jax.experimental.pallas import tpu as pltpu

_SUBLANE = 8


def _round_up(x, m):
    return ((x + m - 1) // m) * m


def _is_v7x():
    try:
        return "v7" in jax.devices()[0].device_kind.lower()
    except Exception:
        return False


def _mlp_body(x_ref, w1_ref, b1_ref, w2_ref, b2_ref, w3_ref, b3_ref):
    mm = w1_ref.dtype
    # Cast the activation tile in VMEM (free on the VPU in this mem-bound regime).
    x = x_ref[...].astype(mm)
    # linear1 + ReLU (f32 accumulation on the MXU, bias/ReLU in f32)
    h1 = jnp.dot(x, w1_ref[...], preferred_element_type=jnp.float32)
    h1 = jnp.maximum(h1 + b1_ref[...], 0.0)
    # linear2 + ReLU (this is `f`)
    f = jnp.dot(h1.astype(mm), w2_ref[...], preferred_element_type=jnp.float32)
    f = jnp.maximum(f + b2_ref[...], 0.0)
    # linear3 (no activation); narrow (out_c) store -- masked vst is cheaper than
    # the 64x HBM write amplification of lane-padding.
    out = jnp.dot(f.astype(mm), w3_ref[...], preferred_element_type=jnp.float32)
    out = out + b3_ref[...]
    return out, f


def _gen_kernel_out_only(x_ref, w1_ref, b1_ref, w2_ref, b2_ref, w3_ref, b3_ref,
                         out_ref):
    out, _ = _mlp_body(x_ref, w1_ref, b1_ref, w2_ref, b2_ref, w3_ref, b3_ref)
    out_ref[...] = out.astype(out_ref.dtype)


def _gen_kernel_with_f(x_ref, w1_ref, b1_ref, w2_ref, b2_ref, w3_ref, b3_ref,
                       out_ref, f_ref):
    out, f = _mlp_body(x_ref, w1_ref, b1_ref, w2_ref, b2_ref, w3_ref, b3_ref)
    out_ref[...] = out.astype(out_ref.dtype)
    f_ref[...] = f.astype(f_ref.dtype)


def prepare_params(params, use_bf16=True):
    """Pre-cast weights once (outside the hot path). Optional."""
    mm = jnp.bfloat16 if use_bf16 else jnp.float32
    return {
        "w1": params["w1"].astype(mm), "b1": params["b1"].astype(jnp.float32),
        "w2": params["w2"].astype(mm), "b2": params["b2"].astype(jnp.float32),
        "w3": params["w3"].astype(mm), "b3": params["b3"].astype(jnp.float32),
    }


@functools.partial(jax.jit,
                   static_argnames=("block_b", "output_f", "use_bf16", "f_dtype"))
def generator_forward(x, params, *, block_b=2048, output_f=False, use_bf16=True,
                      f_dtype=jnp.float32):
    """Pallas implementation of Generator.forward.

    x: (B, zc_dim) float32
    params: dict with w1 (zc, nh), b1 (1, nh), w2 (nh, nh), b2 (1, nh),
            w3 (nh, out_c), b3 (1, out_c)   (weights transposed vs. PyTorch)
    """
    B, zc = x.shape
    nh = params["w1"].shape[1]
    out_c = params["w3"].shape[1]
    mm_dtype = jnp.bfloat16 if use_bf16 else jnp.float32
    is_v7x = _is_v7x()

    # Batch tile: large (fills MXU M, amortizes grid-step cost), clamped to B.
    block = min(_round_up(block_b, _SUBLANE), _round_up(B, _SUBLANE))
    block = max(block, _SUBLANE)
    if is_v7x and pl.cdiv(B, block) < 2 and B >= 2 * _SUBLANE:
        # Guarantee >=2 grid steps so the parallel axis shards across both TCs.
        block = max(_SUBLANE, _round_up(pl.cdiv(B, 2), _SUBLANE))
    grid = (pl.cdiv(B, block),)  # ragged last block handled by Pallas, no jnp.pad

    # Weights are tiny (<100 KB); cast once here (no-op if prepare_params used).
    w1 = params["w1"].astype(mm_dtype)
    b1 = params["b1"].astype(jnp.float32)
    w2 = params["w2"].astype(mm_dtype)
    b2 = params["b2"].astype(jnp.float32)
    w3 = params["w3"].astype(mm_dtype)
    b3 = params["b3"].astype(jnp.float32)

    full = lambda shape: pl.BlockSpec(shape, lambda i: (0, 0))  # resident in VMEM
    in_specs = [
        pl.BlockSpec((block, zc), lambda i: (i, 0)),  # x tile (streamed)
        full((zc, nh)),     # w1
        full((1, nh)),      # b1
        full((nh, nh)),     # w2
        full((1, nh)),      # b2
        full((nh, out_c)),  # w3 (true width, no lane padding)
        full((1, out_c)),   # b3
    ]
    operands = (x, w1, b1, w2, b2, w3, b3)

    # VMEM limit from actual tile sizes (double-buffered) + headroom; don't claim
    # all of v7x's 64 MiB.
    itm = jnp.dtype(mm_dtype).itemsize
    tile_bytes = block * zc * jnp.dtype(x.dtype).itemsize + block * out_c * 4
    if output_f:
        tile_bytes += block * nh * jnp.dtype(f_dtype).itemsize
    w_bytes = (zc * nh + nh * nh + nh * out_c) * itm + (2 * nh + out_c) * 4
    need = 2 * (tile_bytes + 2 * w_bytes) + (4 << 20)
    ceiling = (32 << 20) if is_v7x else (64 << 20)
    vmem_limit = int(min(max(need, 8 << 20), ceiling))

    compiler_params = pltpu.CompilerParams(
        dimension_semantics=("parallel",),
        vmem_limit_bytes=vmem_limit,
    )

    if output_f:
        out, f = pl.pallas_call(
            _gen_kernel_with_f,
            out_shape=(
                jax.ShapeDtypeStruct((B, out_c), jnp.float32),
                jax.ShapeDtypeStruct((B, nh), f_dtype),
            ),
            grid_spec=pltpu.PrefetchScalarGridSpec(
                num_scalar_prefetch=0,
                grid=grid,
                in_specs=in_specs,
                out_specs=[
                    pl.BlockSpec((block, out_c), lambda i: (i, 0)),
                    pl.BlockSpec((block, nh), lambda i: (i, 0)),
                ],
            ),
            compiler_params=compiler_params,
        )(*operands)
        return out, f

    out = pl.pallas_call(
        _gen_kernel_out_only,
        out_shape=jax.ShapeDtypeStruct((B, out_c), jnp.float32),
        grid_spec=pltpu.PrefetchScalarGridSpec(
            num_scalar_prefetch=0,
            grid=grid,
            in_specs=in_specs,
            out_specs=pl.BlockSpec((block, out_c), lambda i: (i, 0)),
        ),
        compiler_params=compiler_params,
    )(*operands)
    return out


def init_params(key, zc_dim=32, n_hidden=128, in_channels=2):
    """Deterministic parameter init (PyTorch Linear shapes, transposed)."""
    ks = jax.random.split(key, 6)

    def lin(kw, kb, fan_in, fan_out):
        bound = 1.0 / jnp.sqrt(fan_in)
        w = jax.random.uniform(kw, (fan_in, fan_out), jnp.float32, -bound, bound)
        b = jax.random.uniform(kb, (1, fan_out), jnp.float32, -bound, bound)
        return w, b

    w1, b1 = lin(ks[0], ks[1], zc_dim, n_hidden)
    w2, b2 = lin(ks[2], ks[3], n_hidden, n_hidden)
    w3, b3 = lin(ks[4], ks[5], n_hidden, in_channels)
    return {"w1": w1, "b1": b1, "w2": w2, "b2": b2, "w3": w3, "b3": b3}


def reference_forward(x, p, output_f=False):
    h1 = jnp.maximum(x @ p["w1"] + p["b1"], 0.0)
    f = jnp.maximum(h1 @ p["w2"] + p["b2"], 0.0)
    out = f @ p["w3"] + p["b3"]
    return (out, f) if output_f else out


if __name__ == "__main__":
    key = jax.random.PRNGKey(0)
    k_param, k_x, k_x2, k_x3 = jax.random.split(key, 4)

    zc_dim, n_hidden, in_channels = 32, 128, 2
    params = init_params(k_param, zc_dim, n_hidden, in_channels)

    # --- f32 path, small batch, output_f=True (matches module behaviour), tight tol ---
    B = 8
    x = jax.random.normal(k_x, (B, zc_dim), jnp.float32)
    out, f = generator_forward(x, params, output_f=True, use_bf16=False)
    out = jax.block_until_ready(out)
    f = jax.block_until_ready(f)
    ref_out, ref_f = reference_forward(x, params, output_f=True)
    assert out.shape == (B, in_channels) and f.shape == (B, n_hidden)
    assert jnp.allclose(out, ref_out, atol=1e-5, rtol=1e-5)
    assert jnp.allclose(f, ref_f, atol=1e-5, rtol=1e-5)

    # --- f32 path, non-divisible batch (ragged last block), multi-step grid ---
    B2 = 100
    x2 = jax.random.normal(k_x2, (B2, zc_dim), jnp.float32)
    out2 = jax.block_until_ready(
        generator_forward(x2, params, block_b=64, output_f=False, use_bf16=False))
    ref_out2 = reference_forward(x2, params, output_f=False)
    assert out2.shape == (B2, in_channels)
    assert jnp.allclose(out2, ref_out2, atol=1e-5, rtol=1e-5)

    # --- default (bf16 matmul operands, f32 accumulation) path, looser tolerance ---
    B3 = 50
    x3 = jax.random.normal(k_x3, (B3, zc_dim), jnp.float32)
    prepped = prepare_params(params, use_bf16=True)
    out3, f3 = generator_forward(x3, prepped, output_f=True)
    out3 = jax.block_until_ready(out3)
    f3 = jax.block_until_ready(f3)
    ref_out3, ref_f3 = reference_forward(x3, params, output_f=True)
    assert out3.shape == (B3, in_channels) and f3.shape == (B3, n_hidden)
    assert jnp.allclose(out3, ref_out3, atol=5e-2, rtol=5e-2)
    assert jnp.allclose(f3, ref_f3, atol=5e-2, rtol=5e-2)

    print("KERNEL_OK")
</pallas_src>

<mosaic_0001>
module attributes {stable_mosaic.version = 11 : i64} {
  func.func @_gen_kernel_with_f(%arg0: i32, %arg1: memref<8x32xf32, #tpu.memory_space<vmem>>, %arg2: memref<32x128xf32, #tpu.memory_space<vmem>>, %arg3: memref<1x128xf32, #tpu.memory_space<vmem>>, %arg4: memref<128x128xf32, #tpu.memory_space<vmem>>, %arg5: memref<1x128xf32, #tpu.memory_space<vmem>>, %arg6: memref<128x2xf32, #tpu.memory_space<vmem>>, %arg7: memref<1x2xf32, #tpu.memory_space<vmem>>, %arg8: memref<8x2xf32, #tpu.memory_space<vmem>>, %arg9: memref<8x128xf32, #tpu.memory_space<vmem>>) attributes {dimension_semantics = [#tpu.dimension_semantics<parallel>], iteration_bounds = array<i64: 1>, scalar_prefetch = 0 : i64, scratch_operands = 0 : i64, tpu.core_type = #tpu.core_type<tc>, window_params = [{transform_indices = @transform_0, window_bounds = array<i64: 8, 32>}, {pipeline_mode = #tpu.pipeline_mode<synchronous>, transform_indices = @transform_1, window_bounds = array<i64: 32, 128>}, {pipeline_mode = #tpu.pipeline_mode<synchronous>, transform_indices = @transform_2, window_bounds = array<i64: 1, 128>}, {pipeline_mode = #tpu.pipeline_mode<synchronous>, transform_indices = @transform_3, window_bounds = array<i64: 128, 128>}, {pipeline_mode = #tpu.pipeline_mode<synchronous>, transform_indices = @transform_4, window_bounds = array<i64: 1, 128>}, {pipeline_mode = #tpu.pipeline_mode<synchronous>, transform_indices = @transform_5, window_bounds = array<i64: 128, 2>}, {pipeline_mode = #tpu.pipeline_mode<synchronous>, transform_indices = @transform_6, window_bounds = array<i64: 1, 2>}, {transform_indices = @transform_7, window_bounds = array<i64: 8, 2>}, {transform_indices = @transform_8, window_bounds = array<i64: 8, 128>}]} {
    %c0 = arith.constant 0 : index
    %c0_0 = arith.constant 0 : index
    %0 = vector.load %arg1[%c0, %c0_0] : memref<8x32xf32, #tpu.memory_space<vmem>>, vector<8x32xf32>
    %c0_1 = arith.constant 0 : index
    %c0_2 = arith.constant 0 : index
    %1 = vector.load %arg2[%c0_1, %c0_2] : memref<32x128xf32, #tpu.memory_space<vmem>>, vector<32x128xf32>
    %cst = arith.constant dense<0.000000e+00> : vector<8x128xf32>
    %2 = tpu.matmul %0, %1, %cst {dimension_numbers = #tpu.dot_dimension_numbers<[1], [0], [0], [1], [0, 0, 1, 1], [], []>} : vector<8x32xf32>, vector<32x128xf32>, vector<8x128xf32> -> vector<8x128xf32>
    %c0_3 = arith.constant 0 : index
    %c0_4 = arith.constant 0 : index
    %3 = vector.load %arg3[%c0_3, %c0_4] : memref<1x128xf32, #tpu.memory_space<vmem>>, vector<1x128xf32>
    %4 = vector.broadcast %3 : vector<1x128xf32> to vector<8x128xf32>
    %5 = arith.addf %2, %4 : vector<8x128xf32>
    %cst_5 = arith.constant 0.000000e+00 : f32
    %6 = vector.broadcast %cst_5 : f32 to vector<8x128xf32>
    %7 = arith.maximumf %5, %6 : vector<8x128xf32>
    %c0_6 = arith.constant 0 : index
    %c0_7 = arith.constant 0 : index
    %8 = vector.load %arg4[%c0_6, %c0_7] : memref<128x128xf32, #tpu.memory_space<vmem>>, vector<128x128xf32>
    %cst_8 = arith.constant dense<0.000000e+00> : vector<8x128xf32>
    %9 = tpu.matmul %7, %8, %cst_8 {dimension_numbers = #tpu.dot_dimension_numbers<[1], [0], [0], [1], [0, 0, 1, 1], [], []>} : vector<8x128xf32>, vector<128x128xf32>, vector<8x128xf32> -> vector<8x128xf32>
    %c0_9 = arith.constant 0 : index
    %c0_10 = arith.constant 0 : index
    %10 = vector.load %arg5[%c0_9, %c0_10] : memref<1x128xf32, #tpu.memory_space<vmem>>, vector<1x128xf32>
    %11 = vector.broadcast %10 : vector<1x128xf32> to vector<8x128xf32>
    %12 = arith.addf %9, %11 : vector<8x128xf32>
    %cst_11 = arith.constant 0.000000e+00 : f32
    %13 = vector.broadcast %cst_11 : f32 to vector<8x128xf32>
    %14 = arith.maximumf %12, %13 : vector<8x128xf32>
    %c0_12 = arith.constant 0 : index
    %c0_13 = arith.constant 0 : index
    %15 = vector.load %arg6[%c0_12, %c0_13] : memref<128x2xf32, #tpu.memory_space<vmem>>, vector<128x2xf32>
    %cst_14 = arith.constant dense<0.000000e+00> : vector<8x2xf32>
    %16 = tpu.matmul %14, %15, %cst_14 {dimension_numbers = #tpu.dot_dimension_numbers<[1], [0], [0], [1], [0, 0, 1, 1], [], []>} : vector<8x128xf32>, vector<128x2xf32>, vector<8x2xf32> -> vector<8x2xf32>
    %c0_15 = arith.constant 0 : index
    %c0_16 = arith.constant 0 : index
    %17 = vector.load %arg7[%c0_15, %c0_16] : memref<1x2xf32, #tpu.memory_space<vmem>>, vector<1x2xf32>
    %18 = vector.broadcast %17 : vector<1x2xf32> to vector<8x2xf32>
    %19 = arith.addf %16, %18 : vector<8x2xf32>
    %c0_17 = arith.constant 0 : index
    %c0_18 = arith.constant 0 : index
    %20 = vector.load %arg8[%c0_17, %c0_18] : memref<8x2xf32, #tpu.memory_space<vmem>>, vector<8x2xf32>
    tpu.vector_store %arg8[%c0_17, %c0_18], %19 {strides = array<i32>} : memref<8x2xf32, #tpu.memory_space<vmem>>, vector<8x2xf32>,
    %c0_19 = arith.constant 0 : index
    %c0_20 = arith.constant 0 : index
    %21 = vector.load %arg9[%c0_19, %c0_20] : memref<8x128xf32, #tpu.memory_space<vmem>>, vector<8x128xf32>
    tpu.vector_store %arg9[%c0_19, %c0_20], %14 {strides = array<i32>} : memref<8x128xf32, #tpu.memory_space<vmem>>, vector<8x128xf32>,
    return
  }
  func.func @transform_0(%arg0: i32) -> (i32, i32) {
    %c0_i32 = arith.constant 0 : i32
    %c0_i32_0 = arith.constant 0 : i32
    return %arg0, %c0_i32 : i32, i32
  }
  func.func @transform_1(%arg0: i32) -> (i32, i32) {
    %c0_i32 = arith.constant 0 : i32
    %c0_i32_0 = arith.constant 0 : i32
    %c0_i32_1 = arith.constant 0 : i32
    return %c0_i32, %c0_i32_0 : i32, i32
  }
  func.func @transform_2(%arg0: i32) -> (i32, i32) {
    %c0_i32 = arith.constant 0 : i32
    %c0_i32_0 = arith.constant 0 : i32
    %c0_i32_1 = arith.constant 0 : i32
    return %c0_i32, %c0_i32_0 : i32, i32
  }
  func.func @transform_3(%arg0: i32) -> (i32, i32) {
    %c0_i32 = arith.constant 0 : i32
    %c0_i32_0 = arith.constant 0 : i32
    %c0_i32_1 = arith.constant 0 : i32
    return %c0_i32, %c0_i32_0 : i32, i32
  }
  func.func @transform_4(%arg0: i32) -> (i32, i32) {
    %c0_i32 = arith.constant 0 : i32
    %c0_i32_0 = arith.constant 0 : i32
    %c0_i32_1 = arith.constant 0 : i32
    return %c0_i32, %c0_i32_0 : i32, i32
  }
  func.func @transform_5(%arg0: i32) -> (i32, i32) {
    %c0_i32 = arith.constant 0 : i32
    %c0_i32_0 = arith.constant 0 : i32
    %c0_i32_1 = arith.constant 0 : i32
    return %c0_i32, %c0_i32_0 : i32, i32
  }
  func.func @transform_6(%arg0: i32) -> (i32, i32) {
    %c0_i32 = arith.constant 0 : i32
    %c0_i32_0 = arith.constant 0 : i32
    %c0_i32_1 = arith.constant 0 : i32
    return %c0_i32, %c0_i32_0 : i32, i32
  }
  func.func @transform_7(%arg0: i32) -> (i32, i32) {
    %c0_i32 = arith.constant 0 : i32
    %c0_i32_0 = arith.constant 0 : i32
    return %arg0, %c0_i32 : i32, i32
  }
  func.func @transform_8(%arg0: i32) -> (i32, i32) {
    %c0_i32 = arith.constant 0 : i32
    %c0_i32_0 = arith.constant 0 : i32
    return %arg0, %c0_i32 : i32, i32
  }
}

</mosaic_0001>

<llo_original>
// kernel: generator_forward.1
$region0: #{generator_forward.1}
  #allocation0 [shape = 'u32[]', space=smem, size = 0x4, offset = 0x4, fixed_abs, tag = 'smem constant byte address 0x4 - core index']
  #allocation1 [shape = 'u32[144,128]{1,0:T(1,128)}', space=vmem, size = 0x12000, scoped, tag = 'internal scratch']
  %s0 = inlined_call_operand.vmem [shape: f32[8,32], index: 0, kind: input, shape index: {}]
  %s1 = inlined_call_operand.hbm [shape: f32[32,128], index: 1, kind: input, shape index: {}]
  %s2 = inlined_call_operand.vmem [shape: f32[1,128], index: 2, kind: input, shape index: {}]
  %s3 = inlined_call_operand.vmem [shape: f32[128,128], index: 3, kind: input, shape index: {}]
  %s4 = inlined_call_operand.vmem [shape: f32[1,128], index: 4, kind: input, shape index: {}]
  %s5 = inlined_call_operand.vmem [shape: f32[128,2], index: 5, kind: input, shape index: {}]
  %s6 = inlined_call_operand.vmem [shape: f32[1,2], index: 6, kind: input, shape index: {}]
  %s7 = inlined_call_operand.vmem [shape: f32[8,2], index: 7, kind: output, shape index: {0}]
  %s8 = inlined_call_operand.hbm [shape: f32[8,128], index: 8, kind: output, shape index: {1}]
  %9 = xla_tuple %s7, %s8
  %s10 = sld [smem:[#allocation0]]
  $region50: #{generator_forward.1} parent=0
    _
  %s12 = ssub.s32 1, %s10
  %s13 = scalar_select 0, %s12, %s10
  $region1: #{generator_forward.1} parent=0
    #allocation2 [shape = 'u8[16384]{0}', space=vmem, size = 0x4000, scoped, tag = 'input window, operand 1, single buffered']
    #allocation3 [shape = 's32[1]{0}', space=sflag, size = 0x4, scoped, tag = 'scoped memory for generator_forward.1']
    #allocation4 [shape = 's32[1]{0}', space=sflag, size = 0x4, scoped, tag = 'scoped memory for generator_forward.1']
    #allocation5 [shape = 'u8[4096]{0}', space=vmem, size = 0x1000, scoped, tag = 'output window, operand 1, single buffered']
    %14 = vsyncpa [#allocation3], 0
    %15 = vsyncpa [#allocation4], 0
    // Predicated region
    $region2: #{generator_forward.1} parent=1 // pred_check
      _
    $region3: #{generator_forward.1} parent=1 // pred_check_branch
      %17 = sbr.rel (0) target = $region5
    $region4: #{generator_forward.1} parent=1 // pred_region
      _
    $region5: #{generator_forward.1} parent=1 // pred_fallthru
      _
    // Predicated region
    $region6: #{generator_forward.1} parent=1 // pred_check
      _
    $region7: #{generator_forward.1} parent=1 // pred_check_branch
      %19 = sbr.rel (0) target = $region9
    $region8: #{generator_forward.1} parent=1 // pred_region
      %s21 = ssub.s32 512, 512
      %22 = vsyncadd [#allocation3], %s21
      %s23 = sshll.u32 [#allocation2], 4
      %s24 = int_to_ptr.vmem [resolvable:$true] %s23
      %29 = dma.hbm_to_vmem [thread:$0]  %s1, 512, %s24, [#allocation3], 128, 128, 8
    $region9: #{generator_forward.1} parent=1 // pred_fallthru
      _
    // Predicated region
    $region10: #{generator_forward.1} parent=1 // pred_check
      _
    $region11: #{generator_forward.1} parent=1 // pred_check_branch
      %31 = sbr.rel (0) target = $region13
    $region12: #{generator_forward.1} parent=1 // pred_region
      _
    $region13: #{generator_forward.1} parent=1 // pred_fallthru
      _
    // Predicated region
    $region14: #{generator_forward.1} parent=1 // pred_check
      _
    $region15: #{generator_forward.1} parent=1 // pred_check_branch
      %33 = sbr.rel (0) target = $region17
    $region16: #{generator_forward.1} parent=1 // pred_region
      _
    $region17: #{generator_forward.1} parent=1 // pred_fallthru
      _
    // Predicated region
    $region18: #{generator_forward.1} parent=1 // pred_check
      _
    $region19: #{generator_forward.1} parent=1 // pred_check_branch
      %35 = sbr.rel (0) target = $region21
    $region20: #{generator_forward.1} parent=1 // pred_region
      _
    $region21: #{generator_forward.1} parent=1 // pred_fallthru
      _
    // Predicated region
    $region22: #{generator_forward.1} parent=1 // pred_check
      _
    $region23: #{generator_forward.1} parent=1 // pred_check_branch
      %37 = sbr.rel (0) target = $region25
    $region24: #{generator_forward.1} parent=1 // pred_region
      _
    $region25: #{generator_forward.1} parent=1 // pred_fallthru
      _
    // Predicated region
    $region26: #{generator_forward.1} parent=1 // pred_check
      _
    $region27: #{generator_forward.1} parent=1 // pred_check_branch
      %39 = sbr.rel (0) target = $region29
    $region28: #{generator_forward.1} parent=1 // pred_region
      _
    $region29: #{generator_forward.1} parent=1 // pred_fallthru
      _
    // Predicated region
    $region30: #{generator_forward.1} parent=1 // pred_check
      _
    $region31: #{generator_forward.1} parent=1 // pred_check_branch
      %41 = sbr.rel (0) target = $region33
    $region32: #{generator_forward.1} parent=1 // pred_region
      %42 = dma.done [#allocation3], 512
    $region33: #{generator_forward.1} parent=1 // pred_fallthru
      _
    %v43 = vld [vmem:[%s0] sm:$0xff]
    %v44 = vld [vmem:[#allocation2] sm:$0xff]
    %v45 = vld [vmem:[#allocation2 + $0x8] sm:$0xff]
    %v46 = vld [vmem:[#allocation2 + $0x10] sm:$0xff]
    %v47 = vld [vmem:[#allocation2 + $0x18] sm:$0xff]
    %v48 = vld [vmem:[%s2] sm:$0x1]
    %v50 = vlaneseq
    %v51 = vshrl.u32 %v50, 7
    %v52 = vsub.s32 0, %v51
    %v53 = vrot.slane %v48, %v52
    %vm55 = vcmask 261120
    %v57 = vsel %vm55, %v43, 0
    %59 = vmatprep.subr.mxu0 0.0
    %60 = vmatpush1.msra.mxu0 %v44
    %61 = vmatprep.subr.mxu0 0.0
    %62 = vmatpush1.msra.mxu0 %v45
    %63 = vmatprep.subr.mxu0 0.0
    %64 = vmatpush1.msra.mxu0 %v46
    %65 = vmatprep.subr.mxu0 0.0
    %66 = vmatpush1.msra.mxu0 %v47
    %67 = vmatprep.subr.mxu0 0.0
    %68 = vmatpush1.msra.mxu0 0.0
    %69 = vmatprep.subr.mxu0 0.0
    %70 = vmatpush1.msra.mxu0 0.0
    %71 = vmatprep.subr.mxu0 0.0
    %72 = vmatpush1.msra.mxu0 0.0
    %73 = vmatprep.subr.mxu0 0.0
    %74 = vmatpush1.msra.mxu0 0.0
    %75 = vmatprep.subr.mxu0 0.0
    %76 = vmatpush1.msra.mxu0 0.0
    %77 = vmatprep.subr.mxu0 0.0
    %78 = vmatpush1.msra.mxu0 0.0
    %79 = vmatprep.subr.mxu0 0.0
    %80 = vmatpush1.msra.mxu0 0.0
    %81 = vmatprep.subr.mxu0 0.0
    %82 = vmatpush1.msra.mxu0 0.0
    %83 = vmatprep.subr.mxu0 0.0
    %84 = vmatpush1.msra.mxu0 0.0
    %85 = vmatprep.subr.mxu0 0.0
    %86 = vmatpush1.msra.mxu0 0.0
    %87 = vmatprep.subr.mxu0 0.0
    %88 = vmatpush1.msra.mxu0 0.0
    %89 = vmatprep.subr.mxu0 0.0
    %90 = vmatpush1.msra.mxu0 0.0
    %91 = vmatprep.subr.mxu0 0.0
    %92 = vmatpush1.msra.mxu0 0.0
    %93 = vmatprep.subr.mxu0 0.0
    %94 = vmatpush1.msra.mxu0 0.0
    %95 = vmatprep.subr.mxu0 0.0
    %96 = vmatpush1.msra.mxu0 0.0
    %97 = vmatprep.subr.mxu0 0.0
    %98 = vmatpush1.msra.mxu0 0.0
    %99 = vmatprep.subr.mxu0 0.0
    %100 = vmatpush1.msra.mxu0 0.0
    %101 = vmatprep.subr.mxu0 0.0
    %102 = vmatpush1.msra.mxu0 0.0
    %103 = vmatprep.subr.mxu0 0.0
    %104 = vmatpush1.msra.mxu0 0.0
    %105 = vmatprep.subr.mxu0 0.0
    %106 = vmatpush1.msra.mxu0 0.0
    %107 = vmatprep.subr.mxu0 0.0
    %108 = vmatpush1.msra.mxu0 0.0
    %109 = vmatprep.subr.mxu0 0.0
    %110 = vmatpush1.msra.mxu0 0.0
    %111 = vmatprep.subr.mxu0 0.0
    %112 = vmatpush1.msra.mxu0 0.0
    %113 = vmatprep.subr.mxu0 0.0
    %114 = vmatpush1.msra.mxu0 0.0
    %115 = vmatprep.subr.mxu0 0.0
    %116 = vmatpush1.msra.mxu0 0.0
    %117 = vmatprep.subr.mxu0 0.0
    %118 = vmatpush1.msra.mxu0 0.0
    %119 = vmatprep.subr.mxu0 0.0
    %120 = vmatpush1.msra.mxu0 0.0
    %121 = vmatprep.subr.mxu0 0.0
    %122 = vmatpush1.msra.mxu0 0.0
    %123 = vmatprep.mubr.f32.mxu0 0.0
    %124 = vmatmul.mubr.f32.gmra.mrb[0].mxu0 %v57
    %v125 = vpop.f32.mrb[0].mxu0
    %v126 = vadd.f32 %v53, %v125
    %v127 = vpop.f32.mrb[0].mxu0
    %128 = vdwg.mxu0
    %v129 = vmax.f32 %v126, 0.0
    %v130 = vld [vmem:[%s3] sm:$0xff]
    %v131 = vld [vmem:[%s3 + $0x8] sm:$0xff]
    %v132 = vld [vmem:[%s3 + $0x10] sm:$0xff]
    %v133 = vld [vmem:[%s3 + $0x18] sm:$0xff]
    %v134 = vld [vmem:[%s3 + $0x20] sm:$0xff]
    %v135 = vld [vmem:[%s3 + $0x28] sm:$0xff]
    %v136 = vld [vmem:[%s3 + $0x30] sm:$0xff]
    %v137 = vld [vmem:[%s3 + $0x38] sm:$0xff]
    %v138 = vld [vmem:[%s3 + $0x40] sm:$0xff]
    %v139 = vld [vmem:[%s3 + $0x48] sm:$0xff]
    %v140 = vld [vmem:[%s3 + $0x50] sm:$0xff]
    %v141 = vld [vmem:[%s3 + $0x58] sm:$0xff]
    %v142 = vld [vmem:[%s3 + $0x60] sm:$0xff]
    %v143 = vld [vmem:[%s3 + $0x68] sm:$0xff]
    %v144 = vld [vmem:[%s3 + $0x70] sm:$0xff]
    %v145 = vld [vmem:[%s3 + $0x78] sm:$0xff]
    %v146 = vld [vmem:[%s4] sm:$0x1]
    %v148 = vlaneseq
    %v149 = vshrl.u32 %v148, 7
    %v150 = vsub.s32 0, %v149
    %v151 = vrot.slane %v146, %v150
    %153 = vmatprep.subr.mxu0 0.0
    %154 = vmatpush1.msra.mxu0 %v130
    %155 = vmatprep.subr.mxu0 0.0
    %156 = vmatpush1.msra.mxu0 %v131
    %157 = vmatprep.subr.mxu0 0.0
    %158 = vmatpush1.msra.mxu0 %v132
    %159 = vmatprep.subr.mxu0 0.0
    %160 = vmatpush1.msra.mxu0 %v133
    %161 = vmatprep.subr.mxu0 0.0
    %162 = vmatpush1.msra.mxu0 %v134
    %163 = vmatprep.subr.mxu0 0.0
    %164 = vmatpush1.msra.mxu0 %v135
    %165 = vmatprep.subr.mxu0 0.0
    %166 = vmatpush1.msra.mxu0 %v136
    %167 = vmatprep.subr.mxu0 0.0
    %168 = vmatpush1.msra.mxu0 %v137
    %169 = vmatprep.subr.mxu0 0.0
    %170 = vmatpush1.msra.mxu0 %v138
    %171 = vmatprep.subr.mxu0 0.0
    %172 = vmatpush1.msra.mxu0 %v139
    %173 = vmatprep.subr.mxu0 0.0
    %174 = vmatpush1.msra.mxu0 %v140
    %175 = vmatprep.subr.mxu0 0.0
    %176 = vmatpush1.msra.mxu0 %v141
    %177 = vmatprep.subr.mxu0 0.0
    %178 = vmatpush1.msra.mxu0 %v142
    %179 = vmatprep.subr.mxu0 0.0
    %180 = vmatpush1.msra.mxu0 %v143
    %181 = vmatprep.subr.mxu0 0.0
    %182 = vmatpush1.msra.mxu0 %v144
    %183 = vmatprep.subr.mxu0 0.0
    %184 = vmatpush1.msra.mxu0 %v145
    %185 = vmatprep.subr.mxu0 0.0
    %186 = vmatpush1.msra.mxu0 0.0
    %187 = vmatprep.subr.mxu0 0.0
    %188 = vmatpush1.msra.mxu0 0.0
    %189 = vmatprep.subr.mxu0 0.0
    %190 = vmatpush1.msra.mxu0 0.0
    %191 = vmatprep.subr.mxu0 0.0
    %192 = vmatpush1.msra.mxu0 0.0
    %193 = vmatprep.subr.mxu0 0.0
    %194 = vmatpush1.msra.mxu0 0.0
    %195 = vmatprep.subr.mxu0 0.0
    %196 = vmatpush1.msra.mxu0 0.0
    %197 = vmatprep.subr.mxu0 0.0
    %198 = vmatpush1.msra.mxu0 0.0
    %199 = vmatprep.subr.mxu0 0.0
    %200 = vmatpush1.msra.mxu0 0.0
    %201 = vmatprep.subr.mxu0 0.0
    %202 = vmatpush1.msra.mxu0 0.0
    %203 = vmatprep.subr.mxu0 0.0
    %204 = vmatpush1.msra.mxu0 0.0
    %205 = vmatprep.subr.mxu0 0.0
    %206 = vmatpush1.msra.mxu0 0.0
    %207 = vmatprep.subr.mxu0 0.0
    %208 = vmatpush1.msra.mxu0 0.0
    %209 = vmatprep.subr.mxu0 0.0
    %210 = vmatpush1.msra.mxu0 0.0
    %211 = vmatprep.subr.mxu0 0.0
    %212 = vmatpush1.msra.mxu0 0.0
    %213 = vmatprep.subr.mxu0 0.0
    %214 = vmatpush1.msra.mxu0 0.0
    %215 = vmatprep.subr.mxu0 0.0
    %216 = vmatpush1.msra.mxu0 0.0
    %217 = vmatprep.mubr.f32.mxu0 0.0
    %218 = vmatmul.mubr.f32.gmra.mrb[0].mxu0 %v129
    %v219 = vpop.f32.mrb[0].mxu0
    %v220 = vadd.f32 %v151, %v219
    %v221 = vpop.f32.mrb[0].mxu0
    %222 = vdwg.mxu0
    %v223 = vmax.f32 %v220, 0.0
    %v224 = vld [vmem:[%s5] sm:$0xff]
    %v225 = vld [vmem:[%s5 + $0x8] sm:$0xff]
    %v226 = vld [vmem:[%s5 + $0x10] sm:$0xff]
    %v227 = vld [vmem:[%s5 + $0x18] sm:$0xff]
    %v228 = vld [vmem:[%s5 + $0x20] sm:$0xff]
    %v229 = vld [vmem:[%s5 + $0x28] sm:$0xff]
    %v230 = vld [vmem:[%s5 + $0x30] sm:$0xff]
    %v231 = vld [vmem:[%s5 + $0x38] sm:$0xff]
    %v232 = vld [vmem:[%s5 + $0x40] sm:$0xff]
    %v233 = vld [vmem:[%s5 + $0x48] sm:$0xff]
    %v234 = vld [vmem:[%s5 + $0x50] sm:$0xff]
    %v235 = vld [vmem:[%s5 + $0x58] sm:$0xff]
    %v236 = vld [vmem:[%s5 + $0x60] sm:$0xff]
    %v237 = vld [vmem:[%s5 + $0x68] sm:$0xff]
    %v238 = vld [vmem:[%s5 + $0x70] sm:$0xff]
    %v239 = vld [vmem:[%s5 + $0x78] sm:$0xff]
    %v240 = vld [vmem:[%s6] sm:$0x1]
    %v242 = vlaneseq
    %v243 = vshrl.u32 %v242, 7
    %v244 = vsub.s32 0, %v243
    %v245 = vrot.slane %v240, %v244
    %247 = vmatprep.subr.mxu0 0.0
    %248 = vmatpush1.msra.mxu0 %v224
    %249 = vmatprep.subr.mxu0 0.0
    %250 = vmatpush1.msra.mxu0 %v225
    %251 = vmatprep.subr.mxu0 0.0
    %252 = vmatpush1.msra.mxu0 %v226
    %253 = vmatprep.subr.mxu0 0.0
    %254 = vmatpush1.msra.mxu0 %v227
    %255 = vmatprep.subr.mxu0 0.0
    %256 = vmatpush1.msra.mxu0 %v228
    %257 = vmatprep.subr.mxu0 0.0
    %258 = vmatpush1.msra.mxu0 %v229
    %259 = vmatprep.subr.mxu0 0.0
    %260 = vmatpush1.msra.mxu0 %v230
    %261 = vmatprep.subr.mxu0 0.0
    %262 = vmatpush1.msra.mxu0 %v231
    %263 = vmatprep.subr.mxu0 0.0
    %264 = vmatpush1.msra.mxu0 %v232
    %265 = vmatprep.subr.mxu0 0.0
    %266 = vmatpush1.msra.mxu0 %v233
    %267 = vmatprep.subr.mxu0 0.0
    %268 = vmatpush1.msra.mxu0 %v234
    %269 = vmatprep.subr.mxu0 0.0
    %270 = vmatpush1.msra.mxu0 %v235
    %271 = vmatprep.subr.mxu0 0.0
    %272 = vmatpush1.msra.mxu0 %v236
    %273 = vmatprep.subr.mxu0 0.0
    %274 = vmatpush1.msra.mxu0 %v237
    %275 = vmatprep.subr.mxu0 0.0
    %276 = vmatpush1.msra.mxu0 %v238
    %277 = vmatprep.subr.mxu0 0.0
    %278 = vmatpush1.msra.mxu0 %v239
    %279 = vmatprep.subr.mxu0 0.0
    %280 = vmatpush1.msra.mxu0 0.0
    %281 = vmatprep.subr.mxu0 0.0
    %282 = vmatpush1.msra.mxu0 0.0
    %283 = vmatprep.subr.mxu0 0.0
    %284 = vmatpush1.msra.mxu0 0.0
    %285 = vmatprep.subr.mxu0 0.0
    %286 = vmatpush1.msra.mxu0 0.0
    %287 = vmatprep.subr.mxu0 0.0
    %288 = vmatpush1.msra.mxu0 0.0
    %289 = vmatprep.subr.mxu0 0.0
    %290 = vmatpush1.msra.mxu0 0.0
    %291 = vmatprep.subr.mxu0 0.0
    %292 = vmatpush1.msra.mxu0 0.0
    %293 = vmatprep.subr.mxu0 0.0
    %294 = vmatpush1.msra.mxu0 0.0
    %295 = vmatprep.subr.mxu0 0.0
    %296 = vmatpush1.msra.mxu0 0.0
    %297 = vmatprep.subr.mxu0 0.0
    %298 = vmatpush1.msra.mxu0 0.0
    %299 = vmatprep.subr.mxu0 0.0
    %300 = vmatpush1.msra.mxu0 0.0
    %301 = vmatprep.subr.mxu0 0.0
    %302 = vmatpush1.msra.mxu0 0.0
    %303 = vmatprep.subr.mxu0 0.0
    %304 = vmatpush1.msra.mxu0 0.0
    %305 = vmatprep.subr.mxu0 0.0
    %306 = vmatpush1.msra.mxu0 0.0
    %307 = vmatprep.subr.mxu0 0.0
    %308 = vmatpush1.msra.mxu0 0.0
    %309 = vmatprep.subr.mxu0 0.0
    %310 = vmatpush1.msra.mxu0 0.0
    %311 = vmatprep.mubr.f32.mxu0 0.0
    %312 = vmatmul.mubr.f32.gmra.mrb[0].mxu0 %v223
    %v313 = vpop.f32.mrb[0].mxu0
    %v314 = vadd.f32 %v245, %v313
    %v315 = vpop.f32.mrb[0].mxu0
    %316 = vdwg.mxu0
    %vm317 = vcmask 15360
    %318 = vst.msk [vmem:[%s7] sm:$0xff] %vm317, %v314
    %319 = vst [vmem:[#allocation5] sm:$0xff] %v223
    // Predicated region
    $region34: #{generator_forward.1} parent=1 // pred_check
      _
    $region35: #{generator_forward.1} parent=1 // pred_check_branch
      %321 = sbr.rel (0) target = $region37
    $region36: #{generator_forward.1} parent=1 // pred_region
      _
    $region37: #{generator_forward.1} parent=1 // pred_fallthru
      _
    // Predicated region
    $region38: #{generator_forward.1} parent=1 // pred_check
      _
    $region39: #{generator_forward.1} parent=1 // pred_check_branch
      %323 = sbr.rel (0) target = $region41
    $region40: #{generator_forward.1} parent=1 // pred_region
      %s325 = ssub.s32 128, 128
      %326 = vsyncadd [#allocation4], %s325
      %s328 = sshll.u32 [#allocation5], 4
      %s329 = int_to_ptr.vmem [resolvable:$true] %s328
      %331 = dma.vmem_to_hbm [thread:$0]  %s329, 128, %s8, [#allocation4]
    $region41: #{generator_forward.1} parent=1 // pred_fallthru
      _
    // Predicated region
    $region42: #{generator_forward.1} parent=1 // pred_check
      _
    $region43: #{generator_forward.1} parent=1 // pred_check_branch
      %333 = sbr.rel (0) target = $region45
    $region44: #{generator_forward.1} parent=1 // pred_region
      _
    $region45: #{generator_forward.1} parent=1 // pred_fallthru
      _
    // Predicated region
    $region46: #{generator_forward.1} parent=1 // pred_check
      _
    $region47: #{generator_forward.1} parent=1 // pred_check_branch
      %335 = sbr.rel (0) target = $region49
    $region48: #{generator_forward.1} parent=1 // pred_region
      %336 = dma.done [#allocation4], 128
    $region49: #{generator_forward.1} parent=1 // pred_fallthru
      _
    %337 = vsyncpa [#allocation3], 1
    %338 = vsyncpa [#allocation4], 1

</llo_original>
